<compile_context>
chip_gen: v6e
topology: v6e:2x2x1
jax: 0.10.0
libtpu: 0.0.40
codegen_flags: <defaults>
</compile_context>

<pallas_src>
import functools

import jax
import jax.numpy as jnp
from jax.experimental import pallas as pl
from jax.experimental.pallas import tpu as pltpu

ALPHA = 1.5
EMBEDDING_DIM = 32     # small stand-in for 150 (padded to 128 lanes)
VOCAB_SIZE = 50        # small synthetic vocab
BATCH = 8

TILE_B_MAX = 1024      # rows per grid step (fits comfortably in scoped VMEM
                       # on v5e/v6e/v7x with D_pad up to 256, double-buffered)


def _round_up(x, m):
    return ((x + m - 1) // m) * m


def glove_kernel(vi_ref, vj_ref, sc_ref, diff_s1_ref, loss_ref, *, alpha):
    """One batch tile.

    vi_ref, vj_ref : [TILE_B, D_pad]  f32
    sc_ref         : [3, TILE_B]      f32   rows = (bi, bj, counts)
    diff_s1_ref    : [1, TILE_B]      f32   per-pair diff_s1
    loss_ref       : [1, TILE_B]      f32   per-pair loss contribution
    """
    vi = vi_ref[...]                      # [TILE_B, D_pad]
    vj = vj_ref[...]                      # [TILE_B, D_pad]
    bi = sc_ref[0, :]                     # [TILE_B] (lane vector)
    bj = sc_ref[1, :]
    counts_raw = sc_ref[2, :]

    hundred = jnp.float32(100.0)
    # wf(x): x > 100 -> 100**alpha else x**alpha (threshold hardcoded to 100,
    # matching the reference which ignores x_max).
    if alpha == 1.5:
        pow_a = counts_raw * jnp.sqrt(counts_raw)   # x**1.5, no log/exp path
    else:
        pow_a = jnp.power(counts_raw, jnp.float32(alpha))
    weights = jnp.where(counts_raw > hundred, jnp.float32(100.0 ** alpha), pow_a)
    # cf(x): clamp at 100
    counts = jnp.minimum(counts_raw, hundred)

    dot = jnp.sum(vi * vj, axis=1)                      # [TILE_B]
    diff_pure = dot + bi + bj                           # [TILE_B]
    diff_s1 = diff_pure - counts                        # [TILE_B]
    diff_s2 = diff_s1 * diff_s1                         # [TILE_B]

    diff_s1_ref[0, :] = diff_s1
    loss_ref[0, :] = diff_s2 * weights + jnp.float32(5.0) * diff_pure * diff_pure


def glove_forward(w, b_i, data_i, data_j, counts, x_max, alpha):
    """Mirrors Glove.forward(data_i, data_j, counts, x_max, alpha).

    x_max is accepted but unused, exactly like the PyTorch reference.
    Returns (output, diff_s2.sum(), diff_s1).
    """
    del x_max  # unused in the reference implementation

    # ----- embedding lookups (glue) -------------------------------------
    v_i = jnp.take(w, data_i, axis=0).astype(jnp.float32)        # [B, D]
    v_j = jnp.take(w, data_j, axis=0).astype(jnp.float32)        # [B, D]
    bi = jnp.take(b_i[:, 0], data_i, axis=0).astype(jnp.float32)  # [B]
    bj = jnp.take(b_i[:, 0], data_j, axis=0).astype(jnp.float32)  # [B]
    cts = counts.astype(jnp.float32)                              # [B]

    B, D = v_i.shape
    D_pad = _round_up(D, 128)
    TILE_B = min(TILE_B_MAX, _round_up(max(B, 1), 128))
    B_pad = _round_up(B, TILE_B)
    num_tiles = B_pad // TILE_B

    # Zero padding contributes exactly 0 to every output (dot=0, bi=bj=0,
    # counts=0 -> weights=0, diff_pure=0, diff_s1=0, loss_row=0).
    v_i_p = jnp.pad(v_i, ((0, B_pad - B), (0, D_pad - D)))
    v_j_p = jnp.pad(v_j, ((0, B_pad - B), (0, D_pad - D)))
    scalars = jnp.pad(jnp.stack([bi, bj, cts], axis=0),           # [3, B]
                      ((0, 0), (0, B_pad - B)))                   # [3, B_pad]

    diff_s1_out, loss_rows = pl.pallas_call(
        functools.partial(glove_kernel, alpha=alpha),
        out_shape=(
            jax.ShapeDtypeStruct((1, B_pad), jnp.float32),   # diff_s1 (lane-dense)
            jax.ShapeDtypeStruct((1, B_pad), jnp.float32),   # per-pair loss terms
        ),
        grid=(num_tiles,),
        in_specs=[
            pl.BlockSpec((TILE_B, D_pad), lambda i: (i, 0)),
            pl.BlockSpec((TILE_B, D_pad), lambda i: (i, 0)),
            pl.BlockSpec((3, TILE_B), lambda i: (0, i)),
        ],
        out_specs=(
            pl.BlockSpec((1, TILE_B), lambda i: (0, i)),
            pl.BlockSpec((1, TILE_B), lambda i: (0, i)),
        ),
        compiler_params=pltpu.CompilerParams(
            dimension_semantics=("parallel",)),
    )(v_i_p, v_j_p, scalars)

    diff_s1_full = diff_s1_out[0]                         # [B_pad]
    # Padded rows are exactly 0 -> reductions over the padded arrays are exact.
    output = jnp.sum(loss_rows)
    s2sum = jnp.sum(diff_s1_full * diff_s1_full)
    return output, s2sum, diff_s1_full[:B]


def glove_forward_ref(w, b_i, data_i, data_j, counts, x_max, alpha):
    """Pure-JAX reference mirroring the PyTorch forward."""
    del x_max
    v_i = jnp.take(w, data_i, axis=0)
    v_j = jnp.take(w, data_j, axis=0)
    bi = jnp.take(b_i, data_i, axis=0)[:, 0]
    bj = jnp.take(b_i, data_j, axis=0)[:, 0]
    weights = jnp.where(counts > 100.0, 100.0 ** alpha, counts ** alpha)
    counts_c = jnp.where(counts > 100.0, 100.0, counts)
    diff_pure = (v_i * v_j).sum(1) + bi + bj
    diff_s1 = diff_pure - counts_c
    diff_s2 = diff_s1 ** 2
    output = (diff_s2 * weights + 5.0 * diff_pure ** 2).sum()
    return output, diff_s2.sum(), diff_s1


if __name__ == "__main__":
    key = jax.random.PRNGKey(0)
    k_w, k_b, k_i, k_j, k_c = jax.random.split(key, 5)

    # Parameters (nn.init.uniform -> U[0,1)), deterministic.
    w = jax.random.uniform(k_w, (VOCAB_SIZE, EMBEDDING_DIM), dtype=jnp.float32)
    b_i = jax.random.uniform(k_b, (VOCAB_SIZE, 1), dtype=jnp.float32)

    # Inputs.
    data_i = jax.random.randint(k_i, (BATCH,), 0, VOCAB_SIZE, dtype=jnp.int32)
    data_j = jax.random.randint(k_j, (BATCH,), 0, VOCAB_SIZE, dtype=jnp.int32)
    # co-occurrence counts, some above the 100 clamp threshold
    counts = jax.random.uniform(k_c, (BATCH,), minval=1.0, maxval=200.0,
                                dtype=jnp.float32)
    x_max = 100.0  # unused, mirrors the reference signature

    out, s2sum, diff_s1 = glove_forward(w, b_i, data_i, data_j, counts,
                                        x_max, ALPHA)
    jax.block_until_ready((out, s2sum, diff_s1))

    # Sanity check against pure-JAX reference.
    out_r, s2sum_r, diff_s1_r = glove_forward_ref(w, b_i, data_i, data_j,
                                                  counts, x_max, ALPHA)
    assert jnp.allclose(out, out_r, rtol=1e-4, atol=1e-3), (out, out_r)
    assert jnp.allclose(s2sum, s2sum_r, rtol=1e-4, atol=1e-3), (s2sum, s2sum_r)
    assert jnp.allclose(diff_s1, diff_s1_r, rtol=1e-4, atol=1e-4)

    print("KERNEL_OK")
</pallas_src>

<mosaic_0001>
module attributes {stable_mosaic.version = 11 : i64} {
  func.func @glove_kernel(%arg0: i32, %arg1: memref<128x128xf32, #tpu.memory_space<vmem>>, %arg2: memref<128x128xf32, #tpu.memory_space<vmem>>, %arg3: memref<3x128xf32, #tpu.memory_space<vmem>>, %arg4: memref<1x128xf32, #tpu.memory_space<vmem>>, %arg5: memref<1x128xf32, #tpu.memory_space<vmem>>) attributes {dimension_semantics = [#tpu.dimension_semantics<parallel>], iteration_bounds = array<i64: 1>, scalar_prefetch = 0 : i64, scratch_operands = 0 : i64, tpu.core_type = #tpu.core_type<tc>, window_params = [{transform_indices = @transform_0, window_bounds = array<i64: 128, 128>}, {transform_indices = @transform_1, window_bounds = array<i64: 128, 128>}, {transform_indices = @transform_2, window_bounds = array<i64: 3, 128>}, {transform_indices = @transform_3, window_bounds = array<i64: 1, 128>}, {transform_indices = @transform_4, window_bounds = array<i64: 1, 128>}]} {
    %c0 = arith.constant 0 : index
    %c0_0 = arith.constant 0 : index
    %0 = vector.load %arg1[%c0, %c0_0] : memref<128x128xf32, #tpu.memory_space<vmem>>, vector<128x128xf32>
    %c0_1 = arith.constant 0 : index
    %c0_2 = arith.constant 0 : index
    %1 = vector.load %arg2[%c0_1, %c0_2] : memref<128x128xf32, #tpu.memory_space<vmem>>, vector<128x128xf32>
    %c0_3 = arith.constant 0 : index
    %c0_4 = arith.constant 0 : index
    %2 = vector.load %arg3[%c0_3, %c0_4] : memref<3x128xf32, #tpu.memory_space<vmem>>, vector<1x128xf32>
    %3 = vector.shape_cast %2 : vector<1x128xf32> to vector<128xf32>
    %c1 = arith.constant 1 : index
    %c0_5 = arith.constant 0 : index
    %4 = vector.load %arg3[%c1, %c0_5] : memref<3x128xf32, #tpu.memory_space<vmem>>, vector<1x128xf32>
    %5 = vector.shape_cast %4 : vector<1x128xf32> to vector<128xf32>
    %c2 = arith.constant 2 : index
    %c0_6 = arith.constant 0 : index
    %6 = vector.load %arg3[%c2, %c0_6] : memref<3x128xf32, #tpu.memory_space<vmem>>, vector<1x128xf32>
    %7 = vector.shape_cast %6 : vector<1x128xf32> to vector<128xf32>
    %8 = math.sqrt %7 : vector<128xf32>
    %9 = arith.mulf %7, %8 : vector<128xf32>
    %cst = arith.constant 1.000000e+02 : f32
    %10 = vector.broadcast %cst : f32 to vector<128xf32>
    %11 = arith.cmpf ogt, %7, %10 : vector<128xf32>
    %cst_7 = arith.constant 1.000000e+03 : f32
    %12 = vector.broadcast %cst_7 : f32 to vector<128xf32>
    %13 = arith.select %11, %12, %9 : vector<128xi1>, vector<128xf32>
    %cst_8 = arith.constant 1.000000e+02 : f32
    %14 = vector.broadcast %cst_8 : f32 to vector<128xf32>
    %15 = arith.minimumf %7, %14 : vector<128xf32>
    %16 = arith.mulf %0, %1 : vector<128x128xf32>
    %cst_9 = arith.constant dense<0.000000e+00> : vector<128xf32>
    %17 = vector.multi_reduction <add>, %16, %cst_9 [1] : vector<128x128xf32> to vector<128xf32>
    %18 = arith.addf %17, %3 : vector<128xf32>
    %19 = arith.addf %18, %5 : vector<128xf32>
    %20 = arith.subf %19, %15 : vector<128xf32>
    %21 = arith.mulf %20, %20 : vector<128xf32>
    %c0_10 = arith.constant 0 : index
    %c0_11 = arith.constant 0 : index
    %22 = vector.load %arg4[%c0_10, %c0_11] : memref<1x128xf32, #tpu.memory_space<vmem>>, vector<1x128xf32>
    %23 = vector.shape_cast %22 : vector<1x128xf32> to vector<128xf32>
    %24 = vector.shape_cast %20 : vector<128xf32> to vector<1x128xf32>
    tpu.vector_store %arg4[%c0_10, %c0_11], %24 {strides = array<i32>} : memref<1x128xf32, #tpu.memory_space<vmem>>, vector<1x128xf32>,
    %25 = arith.mulf %21, %13 : vector<128xf32>
    %cst_12 = arith.constant 5.000000e+00 : f32
    %26 = vector.broadcast %cst_12 : f32 to vector<128xf32>
    %27 = arith.mulf %26, %19 : vector<128xf32>
    %28 = arith.mulf %27, %19 : vector<128xf32>
    %29 = arith.addf %25, %28 : vector<128xf32>
    %c0_13 = arith.constant 0 : index
    %c0_14 = arith.constant 0 : index
    %30 = vector.load %arg5[%c0_13, %c0_14] : memref<1x128xf32, #tpu.memory_space<vmem>>, vector<1x128xf32>
    %31 = vector.shape_cast %30 : vector<1x128xf32> to vector<128xf32>
    %32 = vector.shape_cast %29 : vector<128xf32> to vector<1x128xf32>
    tpu.vector_store %arg5[%c0_13, %c0_14], %32 {strides = array<i32>} : memref<1x128xf32, #tpu.memory_space<vmem>>, vector<1x128xf32>,
    return
  }
  func.func @transform_0(%arg0: i32) -> (i32, i32) {
    %c0_i32 = arith.constant 0 : i32
    %c0_i32_0 = arith.constant 0 : i32
    return %arg0, %c0_i32 : i32, i32
  }
  func.func @transform_1(%arg0: i32) -> (i32, i32) {
    %c0_i32 = arith.constant 0 : i32
    %c0_i32_0 = arith.constant 0 : i32
    return %arg0, %c0_i32 : i32, i32
  }
  func.func @transform_2(%arg0: i32) -> (i32, i32) {
    %c0_i32 = arith.constant 0 : i32
    %c0_i32_0 = arith.constant 0 : i32
    return %c0_i32, %arg0 : i32, i32
  }
  func.func @transform_3(%arg0: i32) -> (i32, i32) {
    %c0_i32 = arith.constant 0 : i32
    %c0_i32_0 = arith.constant 0 : i32
    return %c0_i32, %arg0 : i32, i32
  }
  func.func @transform_4(%arg0: i32) -> (i32, i32) {
    %c0_i32 = arith.constant 0 : i32
    %c0_i32_0 = arith.constant 0 : i32
    return %c0_i32, %arg0 : i32, i32
  }
}

</mosaic_0001>

<llo_original>
// kernel: tpu_custom_call.1
$region0: #{tpu_custom_call.1}
  #allocation0 [shape = 'u32[]', space=smem, size = 0x4, offset = 0x4, fixed_abs, tag = 'smem constant byte address 0x4 - core index']
  #allocation1 [shape = 'u32[144,128]{1,0:T(1,128)}', space=vmem, size = 0x12000, scoped, tag = 'internal scratch']
  %s0 = inlined_call_operand.hbm [shape: f32[128,128], index: 0, kind: input, shape index: {}]
  %s1 = inlined_call_operand.hbm [shape: f32[128,128], index: 1, kind: input, shape index: {}]
  %s2 = inlined_call_operand.hbm [shape: f32[3,128], index: 2, kind: input, shape index: {}]
  %s3 = inlined_call_operand.hbm [shape: f32[1,128], index: 3, kind: output, shape index: {0}]
  %s4 = inlined_call_operand.hbm [shape: f32[1,128], index: 4, kind: output, shape index: {1}]
  %5 = xla_tuple %s3, %s4
  %s6 = sld [smem:[#allocation0]]
  $region42: #{tpu_custom_call.1} parent=0
    _
  %s8 = ssub.s32 1, %s6
  %s9 = scalar_select 0, %s8, %s6
  $region1: #{tpu_custom_call.1} parent=0
    #allocation2 [shape = 'u8[65536]{0}', space=vmem, size = 0x10000, scoped, tag = 'input window, operand 0, single buffered']
    #allocation3 [shape = 's32[1]{0}', space=sflag, size = 0x4, scoped, tag = 'scoped memory for tpu_custom_call.1']
    #allocation4 [shape = 's32[1]{0}', space=sflag, size = 0x4, scoped, tag = 'scoped memory for tpu_custom_call.1']
    #allocation5 [shape = 'u8[65536]{0}', space=vmem, size = 0x10000, scoped, tag = 'input window, operand 1, single buffered']
    #allocation6 [shape = 's32[1]{0}', space=sflag, size = 0x4, scoped, tag = 'scoped memory for tpu_custom_call.1']
    #allocation7 [shape = 'u8[2048]{0}', space=vmem, size = 0x800, scoped, tag = 'input window, operand 2, single buffered']
    #allocation8 [shape = 'u8[512]{0}', space=vmem, size = 0x400, scoped, tag = 'output window, operand 0, single buffered']
    #allocation9 [shape = 'u8[512]{0}', space=vmem, size = 0x400, scoped, tag = 'output window, operand 1, single buffered']
    #allocation10 [shape = 's32[1]{0}', space=sflag, size = 0x4, scoped, tag = 'scoped memory for tpu_custom_call.1']
    %10 = vsyncpa [#allocation3], 0
    %11 = vsyncpa [#allocation6], 0
    %12 = vsyncpa [#allocation4], 0
    %13 = vsyncpa [#allocation10], 0
    // Predicated region
    $region2: #{tpu_custom_call.1} parent=1 // pred_check
      _
    $region3: #{tpu_custom_call.1} parent=1 // pred_check_branch
      %15 = sbr.rel (0) target = $region5
    $region4: #{tpu_custom_call.1} parent=1 // pred_region
      %s17 = ssub.s32 2048, 2048
      %18 = vsyncadd [#allocation3], %s17
      %s19 = sshll.u32 [#allocation2], 4
      %s20 = int_to_ptr.vmem [resolvable:$true] %s19
      %25 = dma.hbm_to_vmem [thread:$0]  %s0, 2048, %s20, [#allocation3], 128, 128, 8
    $region5: #{tpu_custom_call.1} parent=1 // pred_fallthru
      _
    // Predicated region
    $region6: #{tpu_custom_call.1} parent=1 // pred_check
      _
    $region7: #{tpu_custom_call.1} parent=1 // pred_check_branch
      %27 = sbr.rel (0) target = $region9
    $region8: #{tpu_custom_call.1} parent=1 // pred_region
      %s29 = ssub.s32 2048, 2048
      %30 = vsyncadd [#allocation6], %s29
      %s31 = sshll.u32 [#allocation5], 4
      %s32 = int_to_ptr.vmem [resolvable:$true] %s31
      %37 = dma.hbm_to_vmem [thread:$0]  %s1, 2048, %s32, [#allocation6], 128, 128, 8
    $region9: #{tpu_custom_call.1} parent=1 // pred_fallthru
      _
    // Predicated region
    $region10: #{tpu_custom_call.1} parent=1 // pred_check
      _
    $region11: #{tpu_custom_call.1} parent=1 // pred_check_branch
      %39 = sbr.rel (0) target = $region13
    $region12: #{tpu_custom_call.1} parent=1 // pred_region
      %s41 = ssub.s32 64, 64
      %42 = vsyncadd [#allocation6], %s41
      %s44 = sshll.u32 [#allocation7], 4
      %s45 = int_to_ptr.vmem [resolvable:$true] %s44
      %47 = dma.hbm_to_vmem [thread:$0]  %s2, 64, %s45, [#allocation6]
    $region13: #{tpu_custom_call.1} parent=1 // pred_fallthru
      _
    // Predicated region
    $region14: #{tpu_custom_call.1} parent=1 // pred_check
      _
    $region15: #{tpu_custom_call.1} parent=1 // pred_check_branch
      %49 = sbr.rel (0) target = $region17
    $region16: #{tpu_custom_call.1} parent=1 // pred_region
      %50 = dma.done [#allocation3], 2048
    $region17: #{tpu_custom_call.1} parent=1 // pred_fallthru
      _
    // Predicated region
    $region18: #{tpu_custom_call.1} parent=1 // pred_check
      _
    $region19: #{tpu_custom_call.1} parent=1 // pred_check_branch
      %52 = sbr.rel (0) target = $region21
    $region20: #{tpu_custom_call.1} parent=1 // pred_region
      %53 = dma.done [#allocation6], 2048
    $region21: #{tpu_custom_call.1} parent=1 // pred_fallthru
      _
    // Predicated region
    $region22: #{tpu_custom_call.1} parent=1 // pred_check
      _
    $region23: #{tpu_custom_call.1} parent=1 // pred_check_branch
      %55 = sbr.rel (0) target = $region25
    $region24: #{tpu_custom_call.1} parent=1 // pred_region
      %56 = dma.done [#allocation6], 64
    $region25: #{tpu_custom_call.1} parent=1 // pred_fallthru
      _
    %v57 = vld [vmem:[#allocation2] sm:$0xff]
    %v58 = vld [vmem:[#allocation2 + $0x8] sm:$0xff]
    %v59 = vld [vmem:[#allocation2 + $0x10] sm:$0xff]
    %v60 = vld [vmem:[#allocation2 + $0x18] sm:$0xff]
    %v61 = vld [vmem:[#allocation2 + $0x20] sm:$0xff]
    %v62 = vld [vmem:[#allocation2 + $0x28] sm:$0xff]
    %v63 = vld [vmem:[#allocation2 + $0x30] sm:$0xff]
    %v64 = vld [vmem:[#allocation2 + $0x38] sm:$0xff]
    %v65 = vld [vmem:[#allocation2 + $0x40] sm:$0xff]
    %v66 = vld [vmem:[#allocation2 + $0x48] sm:$0xff]
    %v67 = vld [vmem:[#allocation2 + $0x50] sm:$0xff]
    %v68 = vld [vmem:[#allocation2 + $0x58] sm:$0xff]
    %v69 = vld [vmem:[#allocation2 + $0x60] sm:$0xff]
    %v70 = vld [vmem:[#allocation2 + $0x68] sm:$0xff]
    %v71 = vld [vmem:[#allocation2 + $0x70] sm:$0xff]
    %v72 = vld [vmem:[#allocation2 + $0x78] sm:$0xff]
    %v73 = vld [vmem:[#allocation5] sm:$0xff]
    %v74 = vld [vmem:[#allocation5 + $0x8] sm:$0xff]
    %v75 = vld [vmem:[#allocation5 + $0x10] sm:$0xff]
    %v76 = vld [vmem:[#allocation5 + $0x18] sm:$0xff]
    %v77 = vld [vmem:[#allocation5 + $0x20] sm:$0xff]
    %v78 = vld [vmem:[#allocation5 + $0x28] sm:$0xff]
    %v79 = vld [vmem:[#allocation5 + $0x30] sm:$0xff]
    %v80 = vld [vmem:[#allocation5 + $0x38] sm:$0xff]
    %v81 = vld [vmem:[#allocation5 + $0x40] sm:$0xff]
    %v82 = vld [vmem:[#allocation5 + $0x48] sm:$0xff]
    %v83 = vld [vmem:[#allocation5 + $0x50] sm:$0xff]
    %v84 = vld [vmem:[#allocation5 + $0x58] sm:$0xff]
    %v85 = vld [vmem:[#allocation5 + $0x60] sm:$0xff]
    %v86 = vld [vmem:[#allocation5 + $0x68] sm:$0xff]
    %v87 = vld [vmem:[#allocation5 + $0x70] sm:$0xff]
    %v88 = vld [vmem:[#allocation5 + $0x78] sm:$0xff]
    %v89 = vld [vmem:[#allocation7] sm:$0x1]
    %v90 = vld [vmem:[#allocation7 + $0x1] sm:$0x1]
    %v91 = vld [vmem:[#allocation7 + $0x2] sm:$0x1]
    %v92 = vrsqrt.pop %v91
    %v93 = vmul.f32 %v91, %v92
    %vm94 = vcmp.eq.f32.partialorder %v91, inf
    %v95 = vsel %vm94, %v91, %v93
    %vm96 = vcmp.eq.f32.partialorder %v91, 0.0
    %v97 = vand.u32 %v91, 2147483648
    %v98 = vsel %vm96, %v97, %v95
    %v99 = vmul.f32 %v91, %v98
    %vm100 = vcmp.gt.f32.partialorder %v91, 100.0
    %v101 = vsel %vm100, 1000.0, %v99
    %v102 = vmin.f32 %v91, 100.0
    %v103 = vmul.f32 %v57, %v73
    %v104 = vmul.f32 %v58, %v74
    %v105 = vmul.f32 %v59, %v75
    %v106 = vmul.f32 %v60, %v76
    %v107 = vmul.f32 %v61, %v77
    %v108 = vmul.f32 %v62, %v78
    %v109 = vmul.f32 %v63, %v79
    %v110 = vmul.f32 %v64, %v80
    %v111 = vmul.f32 %v65, %v81
    %v112 = vmul.f32 %v66, %v82
    %v113 = vmul.f32 %v67, %v83
    %v114 = vmul.f32 %v68, %v84
    %v115 = vmul.f32 %v69, %v85
    %v116 = vmul.f32 %v70, %v86
    %v117 = vmul.f32 %v71, %v87
    %v118 = vmul.f32 %v72, %v88
    %119 = vadd.xlane.f32.xlu0 %v103
    %v120 = vpop.xlane.xlu0 %119
    %121 = vadd.xlane.f32.xlu0 %v104
    %v122 = vpop.xlane.xlu0 %121
    %123 = vadd.xlane.f32.xlu0 %v105
    %v124 = vpop.xlane.xlu0 %123
    %125 = vadd.xlane.f32.xlu0 %v106
    %v126 = vpop.xlane.xlu0 %125
    %127 = vadd.xlane.f32.xlu0 %v107
    %v128 = vpop.xlane.xlu0 %127
    %129 = vadd.xlane.f32.xlu0 %v108
    %v130 = vpop.xlane.xlu0 %129
    %131 = vadd.xlane.f32.xlu0 %v109
    %v132 = vpop.xlane.xlu0 %131
    %133 = vadd.xlane.f32.xlu0 %v110
    %v134 = vpop.xlane.xlu0 %133
    %135 = vadd.xlane.f32.xlu0 %v111
    %v136 = vpop.xlane.xlu0 %135
    %137 = vadd.xlane.f32.xlu0 %v112
    %v138 = vpop.xlane.xlu0 %137
    %139 = vadd.xlane.f32.xlu0 %v113
    %v140 = vpop.xlane.xlu0 %139
    %141 = vadd.xlane.f32.xlu0 %v114
    %v142 = vpop.xlane.xlu0 %141
    %143 = vadd.xlane.f32.xlu0 %v115
    %v144 = vpop.xlane.xlu0 %143
    %145 = vadd.xlane.f32.xlu0 %v116
    %v146 = vpop.xlane.xlu0 %145
    %147 = vadd.xlane.f32.xlu0 %v117
    %v148 = vpop.xlane.xlu0 %147
    %149 = vadd.xlane.f32.xlu0 %v118
    %v150 = vpop.xlane.xlu0 %149
    %v152 = vlaneseq
    %v153 = vshrl.u32 %v152, 7
    %v154 = vsub.s32 0, %v153
    %v155 = vrot.slane %v89, %v154
    %157 = vbcast.lane.b32.xlu0 %v155, 256
    %v158 = vpop.permute.xlu0 %157
    %s160 = sor.u32 256, 8
    %161 = vbcast.lane.b32.xlu0 %v155, %s160
    %v162 = vpop.permute.xlu0 %161
    %s164 = sor.u32 256, 16
    %165 = vbcast.lane.b32.xlu0 %v155, %s164
    %v166 = vpop.permute.xlu0 %165
    %s168 = sor.u32 256, 24
    %169 = vbcast.lane.b32.xlu0 %v155, %s168
    %v170 = vpop.permute.xlu0 %169
    %s172 = sor.u32 256, 32
    %173 = vbcast.lane.b32.xlu0 %v155, %s172
    %v174 = vpop.permute.xlu0 %173
    %s176 = sor.u32 256, 40
    %177 = vbcast.lane.b32.xlu0 %v155, %s176
    %v178 = vpop.permute.xlu0 %177
    %s180 = sor.u32 256, 48
    %181 = vbcast.lane.b32.xlu0 %v155, %s180
    %v182 = vpop.permute.xlu0 %181
    %s184 = sor.u32 256, 56
    %185 = vbcast.lane.b32.xlu0 %v155, %s184
    %v186 = vpop.permute.xlu0 %185
    %s188 = sor.u32 256, 64
    %189 = vbcast.lane.b32.xlu0 %v155, %s188
    %v190 = vpop.permute.xlu0 %189
    %s192 = sor.u32 256, 72
    %193 = vbcast.lane.b32.xlu0 %v155, %s192
    %v194 = vpop.permute.xlu0 %193
    %s196 = sor.u32 256, 80
    %197 = vbcast.lane.b32.xlu0 %v155, %s196
    %v198 = vpop.permute.xlu0 %197
    %s200 = sor.u32 256, 88
    %201 = vbcast.lane.b32.xlu0 %v155, %s200
    %v202 = vpop.permute.xlu0 %201
    %s204 = sor.u32 256, 96
    %205 = vbcast.lane.b32.xlu0 %v155, %s204
    %v206 = vpop.permute.xlu0 %205
    %s208 = sor.u32 256, 104
    %209 = vbcast.lane.b32.xlu0 %v155, %s208
    %v210 = vpop.permute.xlu0 %209
    %s212 = sor.u32 256, 112
    %213 = vbcast.lane.b32.xlu0 %v155, %s212
    %v214 = vpop.permute.xlu0 %213
    %s216 = sor.u32 256, 120
    %217 = vbcast.lane.b32.xlu0 %v155, %s216
    %v218 = vpop.permute.xlu0 %217
    %v235 = vadd.f32 %v120, %v158
    %v236 = vadd.f32 %v122, %v162
    %v237 = vadd.f32 %v124, %v166
    %v238 = vadd.f32 %v126, %v170
    %v239 = vadd.f32 %v128, %v174
    %v240 = vadd.f32 %v130, %v178
    %v241 = vadd.f32 %v132, %v182
    %v242 = vadd.f32 %v134, %v186
    %v243 = vadd.f32 %v136, %v190
    %v244 = vadd.f32 %v138, %v194
    %v245 = vadd.f32 %v140, %v198
    %v246 = vadd.f32 %v142, %v202
    %v247 = vadd.f32 %v144, %v206
    %v248 = vadd.f32 %v146, %v210
    %v249 = vadd.f32 %v148, %v214
    %v250 = vadd.f32 %v150, %v218
    %v252 = vlaneseq
    %v253 = vshrl.u32 %v252, 7
    %v254 = vsub.s32 0, %v253
    %v255 = vrot.slane %v90, %v254
    %257 = vbcast.lane.b32.xlu0 %v255, 256
    %v258 = vpop.permute.xlu0 %257
    %s260 = sor.u32 256, 8
    %261 = vbcast.lane.b32.xlu0 %v255, %s260
    %v262 = vpop.permute.xlu0 %261
    %s264 = sor.u32 256, 16
    %265 = vbcast.lane.b32.xlu0 %v255, %s264
    %v266 = vpop.permute.xlu0 %265
    %s268 = sor.u32 256, 24
    %269 = vbcast.lane.b32.xlu0 %v255, %s268
    %v270 = vpop.permute.xlu0 %269
    %s272 = sor.u32 256, 32
    %273 = vbcast.lane.b32.xlu0 %v255, %s272
    %v274 = vpop.permute.xlu0 %273
    %s276 = sor.u32 256, 40
    %277 = vbcast.lane.b32.xlu0 %v255, %s276
    %v278 = vpop.permute.xlu0 %277
    %s280 = sor.u32 256, 48
    %281 = vbcast.lane.b32.xlu0 %v255, %s280
    %v282 = vpop.permute.xlu0 %281
    %s284 = sor.u32 256, 56
    %285 = vbcast.lane.b32.xlu0 %v255, %s284
    %v286 = vpop.permute.xlu0 %285
    %s288 = sor.u32 256, 64
    %289 = vbcast.lane.b32.xlu0 %v255, %s288
    %v290 = vpop.permute.xlu0 %289
    %s292 = sor.u32 256, 72
    %293 = vbcast.lane.b32.xlu0 %v255, %s292
    %v294 = vpop.permute.xlu0 %293
    %s296 = sor.u32 256, 80
    %297 = vbcast.lane.b32.xlu0 %v255, %s296
    %v298 = vpop.permute.xlu0 %297
    %s300 = sor.u32 256, 88
    %301 = vbcast.lane.b32.xlu0 %v255, %s300
    %v302 = vpop.permute.xlu0 %301
    %s304 = sor.u32 256, 96
    %305 = vbcast.lane.b32.xlu0 %v255, %s304
    %v306 = vpop.permute.xlu0 %305
    %s308 = sor.u32 256, 104
    %309 = vbcast.lane.b32.xlu0 %v255, %s308
    %v310 = vpop.permute.xlu0 %309
    %s312 = sor.u32 256, 112
    %313 = vbcast.lane.b32.xlu0 %v255, %s312
    %v314 = vpop.permute.xlu0 %313
    %s316 = sor.u32 256, 120
    %317 = vbcast.lane.b32.xlu0 %v255, %s316
    %v318 = vpop.permute.xlu0 %317
    %v335 = vadd.f32 %v235, %v258
    %v336 = vadd.f32 %v236, %v262
    %v337 = vadd.f32 %v237, %v266
    %v338 = vadd.f32 %v238, %v270
    %v339 = vadd.f32 %v239, %v274
    %v340 = vadd.f32 %v240, %v278
    %v341 = vadd.f32 %v241, %v282
    %v342 = vadd.f32 %v242, %v286
    %v343 = vadd.f32 %v243, %v290
    %v344 = vadd.f32 %v244, %v294
    %v345 = vadd.f32 %v245, %v298
    %v346 = vadd.f32 %v246, %v302
    %v347 = vadd.f32 %v247, %v306
    %v348 = vadd.f32 %v248, %v310
    %v349 = vadd.f32 %v249, %v314
    %v350 = vadd.f32 %v250, %v318
    %v352 = vlaneseq
    %v353 = vshrl.u32 %v352, 7
    %v354 = vsub.s32 0, %v353
    %v355 = vrot.slane %v102, %v354
    %357 = vbcast.lane.b32.xlu0 %v355, 256
    %v358 = vpop.permute.xlu0 %357
    %s360 = sor.u32 256, 8
    %361 = vbcast.lane.b32.xlu0 %v355, %s360
    %v362 = vpop.permute.xlu0 %361
    %s364 = sor.u32 256, 16
    %365 = vbcast.lane.b32.xlu0 %v355, %s364
    %v366 = vpop.permute.xlu0 %365
    %s368 = sor.u32 256, 24
    %369 = vbcast.lane.b32.xlu0 %v355, %s368
    %v370 = vpop.permute.xlu0 %369
    %s372 = sor.u32 256, 32
    %373 = vbcast.lane.b32.xlu0 %v355, %s372
    %v374 = vpop.permute.xlu0 %373
    %s376 = sor.u32 256, 40
    %377 = vbcast.lane.b32.xlu0 %v355, %s376
    %v378 = vpop.permute.xlu0 %377
    %s380 = sor.u32 256, 48
    %381 = vbcast.lane.b32.xlu0 %v355, %s380
    %v382 = vpop.permute.xlu0 %381
    %s384 = sor.u32 256, 56
    %385 = vbcast.lane.b32.xlu0 %v355, %s384
    %v386 = vpop.permute.xlu0 %385
    %s388 = sor.u32 256, 64
    %389 = vbcast.lane.b32.xlu0 %v355, %s388
    %v390 = vpop.permute.xlu0 %389
    %s392 = sor.u32 256, 72
    %393 = vbcast.lane.b32.xlu0 %v355, %s392
    %v394 = vpop.permute.xlu0 %393
    %s396 = sor.u32 256, 80
    %397 = vbcast.lane.b32.xlu0 %v355, %s396
    %v398 = vpop.permute.xlu0 %397
    %s400 = sor.u32 256, 88
    %401 = vbcast.lane.b32.xlu0 %v355, %s400
    %v402 = vpop.permute.xlu0 %401
    %s404 = sor.u32 256, 96
    %405 = vbcast.lane.b32.xlu0 %v355, %s404
    %v406 = vpop.permute.xlu0 %405
    %s408 = sor.u32 256, 104
    %409 = vbcast.lane.b32.xlu0 %v355, %s408
    %v410 = vpop.permute.xlu0 %409
    %s412 = sor.u32 256, 112
    %413 = vbcast.lane.b32.xlu0 %v355, %s412
    %v414 = vpop.permute.xlu0 %413
    %s416 = sor.u32 256, 120
    %417 = vbcast.lane.b32.xlu0 %v355, %s416
    %v418 = vpop.permute.xlu0 %417
    %v435 = vsub.f32 %v335, %v358
    %v436 = vsub.f32 %v336, %v362
    %v437 = vsub.f32 %v337, %v366
    %v438 = vsub.f32 %v338, %v370
    %v439 = vsub.f32 %v339, %v374
    %v440 = vsub.f32 %v340, %v378
    %v441 = vsub.f32 %v341, %v382
    %v442 = vsub.f32 %v342, %v386
    %v443 = vsub.f32 %v343, %v390
    %v444 = vsub.f32 %v344, %v394
    %v445 = vsub.f32 %v345, %v398
    %v446 = vsub.f32 %v346, %v402
    %v447 = vsub.f32 %v347, %v406
    %v448 = vsub.f32 %v348, %v410
    %v449 = vsub.f32 %v349, %v414
    %v450 = vsub.f32 %v350, %v418
    %v451 = vmul.f32 %v435, %v435
    %v452 = vmul.f32 %v436, %v436
    %v453 = vmul.f32 %v437, %v437
    %v454 = vmul.f32 %v438, %v438
    %v455 = vmul.f32 %v439, %v439
    %v456 = vmul.f32 %v440, %v440
    %v457 = vmul.f32 %v441, %v441
    %v458 = vmul.f32 %v442, %v442
    %v459 = vmul.f32 %v443, %v443
    %v460 = vmul.f32 %v444, %v444
    %v461 = vmul.f32 %v445, %v445
    %v462 = vmul.f32 %v446, %v446
    %v463 = vmul.f32 %v447, %v447
    %v464 = vmul.f32 %v448, %v448
    %v465 = vmul.f32 %v449, %v449
    %v466 = vmul.f32 %v450, %v450
    %483 = vset.pattern.permute.xlu0 0
    %484 = vperm.xlu0 %483, %v435
    %v485 = vpop.permute.xlu0 %484
    %486 = vset.pattern.permute.xlu0 0
    %487 = vperm.xlu0 %486, %v436
    %v488 = vpop.permute.xlu0 %487
    %489 = vset.pattern.permute.xlu0 0
    %490 = vperm.xlu0 %489, %v437
    %v491 = vpop.permute.xlu0 %490
    %492 = vset.pattern.permute.xlu0 0
    %493 = vperm.xlu0 %492, %v438
    %v494 = vpop.permute.xlu0 %493
    %495 = vset.pattern.permute.xlu0 0
    %496 = vperm.xlu0 %495, %v439
    %v497 = vpop.permute.xlu0 %496
    %498 = vset.pattern.permute.xlu0 0
    %499 = vperm.xlu0 %498, %v440
    %v500 = vpop.permute.xlu0 %499
    %501 = vset.pattern.permute.xlu0 0
    %502 = vperm.xlu0 %501, %v441
    %v503 = vpop.permute.xlu0 %502
    %504 = vset.pattern.permute.xlu0 0
    %505 = vperm.xlu0 %504, %v442
    %v506 = vpop.permute.xlu0 %505
    %507 = vset.pattern.permute.xlu0 0
    %508 = vperm.xlu0 %507, %v443
    %v509 = vpop.permute.xlu0 %508
    %510 = vset.pattern.permute.xlu0 0
    %511 = vperm.xlu0 %510, %v444
    %v512 = vpop.permute.xlu0 %511
    %513 = vset.pattern.permute.xlu0 0
    %514 = vperm.xlu0 %513, %v445
    %v515 = vpop.permute.xlu0 %514
    %516 = vset.pattern.permute.xlu0 0
    %517 = vperm.xlu0 %516, %v446
    %v518 = vpop.permute.xlu0 %517
    %519 = vset.pattern.permute.xlu0 0
    %520 = vperm.xlu0 %519, %v447
    %v521 = vpop.permute.xlu0 %520
    %522 = vset.pattern.permute.xlu0 0
    %523 = vperm.xlu0 %522, %v448
    %v524 = vpop.permute.xlu0 %523
    %525 = vset.pattern.permute.xlu0 0
    %526 = vperm.xlu0 %525, %v449
    %v527 = vpop.permute.xlu0 %526
    %528 = vset.pattern.permute.xlu0 0
    %529 = vperm.xlu0 %528, %v450
    %v530 = vpop.permute.xlu0 %529
    %v531 = vlaneseq
    %v532 = vand.u32 %v531, 127
    %v533 = vlaneseq
    %v534 = vshrl.u32 %v533, 7
    %v535 = vsub.s32 %v532, %v534
    %v536 = vrot.slane %v485, %v535
    %v537 = vadd.s32 %v532, 4294967288
    %v538 = vlaneseq
    %v539 = vshrl.u32 %v538, 7
    %v540 = vsub.s32 %v537, %v539
    %v541 = vrot.slane %v488, %v540
    %vm542 = vcmask 130112
    %v543 = vsel %vm542, %v541, %v536
    %v544 = vadd.s32 %v532, 4294967280
    %v545 = vlaneseq
    %v546 = vshrl.u32 %v545, 7
    %v547 = vsub.s32 %v544, %v546
    %v548 = vrot.slane %v491, %v547
    %vm549 = vcmask 195712
    %v550 = vsel %vm549, %v548, %v543
    %v551 = vadd.s32 %v532, 4294967272
    %v552 = vlaneseq
    %v553 = vshrl.u32 %v552, 7
    %v554 = vsub.s32 %v551, %v553
    %v555 = vrot.slane %v494, %v554
    %vm556 = vcmask 261312
    %v557 = vsel %vm556, %v555, %v550
    %v558 = vadd.s32 %v532, 4294967264
    %v559 = vlaneseq
    %v560 = vshrl.u32 %v559, 7
    %v561 = vsub.s32 %v558, %v560
    %v562 = vrot.slane %v497, %v561
    %vm563 = vcmask 326912
    %v564 = vsel %vm563, %v562, %v557
    %v565 = vadd.s32 %v532, 4294967256
    %v566 = vlaneseq
    %v567 = vshrl.u32 %v566, 7
    %v568 = vsub.s32 %v565, %v567
    %v569 = vrot.slane %v500, %v568
    %vm570 = vcmask 392512
    %v571 = vsel %vm570, %v569, %v564
    %v572 = vadd.s32 %v532, 4294967248
    %v573 = vlaneseq
    %v574 = vshrl.u32 %v573, 7
    %v575 = vsub.s32 %v572, %v574
    %v576 = vrot.slane %v503, %v575
    %vm577 = vcmask 458112
    %v578 = vsel %vm577, %v576, %v571
    %v579 = vadd.s32 %v532, 4294967240
    %v580 = vlaneseq
    %v581 = vshrl.u32 %v580, 7
    %v582 = vsub.s32 %v579, %v581
    %v583 = vrot.slane %v506, %v582
    %vm584 = vcmask 523712
    %v585 = vsel %vm584, %v583, %v578
    %v586 = vadd.s32 %v532, 4294967232
    %v587 = vlaneseq
    %v588 = vshrl.u32 %v587, 7
    %v589 = vsub.s32 %v586, %v588
    %v590 = vrot.slane %v509, %v589
    %vm591 = vcmask 589312
    %v592 = vsel %vm591, %v590, %v585
    %v593 = vadd.s32 %v532, 4294967224
    %v594 = vlaneseq
    %v595 = vshrl.u32 %v594, 7
    %v596 = vsub.s32 %v593, %v595
    %v597 = vrot.slane %v512, %v596
    %vm598 = vcmask 654912
    %v599 = vsel %vm598, %v597, %v592
    %v600 = vadd.s32 %v532, 4294967216
    %v601 = vlaneseq
    %v602 = vshrl.u32 %v601, 7
    %v603 = vsub.s32 %v600, %v602
    %v604 = vrot.slane %v515, %v603
    %vm605 = vcmask 720512
    %v606 = vsel %vm605, %v604, %v599
    %v607 = vadd.s32 %v532, 4294967208
    %v608 = vlaneseq
    %v609 = vshrl.u32 %v608, 7
    %v610 = vsub.s32 %v607, %v609
    %v611 = vrot.slane %v518, %v610
    %vm612 = vcmask 786112
    %v613 = vsel %vm612, %v611, %v606
    %v614 = vadd.s32 %v532, 4294967200
    %v615 = vlaneseq
    %v616 = vshrl.u32 %v615, 7
    %v617 = vsub.s32 %v614, %v616
    %v618 = vrot.slane %v521, %v617
    %vm619 = vcmask 851712
    %v620 = vsel %vm619, %v618, %v613
    %v621 = vadd.s32 %v532, 4294967192
    %v622 = vlaneseq
    %v623 = vshrl.u32 %v622, 7
    %v624 = vsub.s32 %v621, %v623
    %v625 = vrot.slane %v524, %v624
    %vm626 = vcmask 917312
    %v627 = vsel %vm626, %v625, %v620
    %v628 = vadd.s32 %v532, 4294967184
    %v629 = vlaneseq
    %v630 = vshrl.u32 %v629, 7
    %v631 = vsub.s32 %v628, %v630
    %v632 = vrot.slane %v527, %v631
    %vm633 = vcmask 982912
    %v634 = vsel %vm633, %v632, %v627
    %v635 = vadd.s32 %v532, 4294967176
    %v636 = vlaneseq
    %v637 = vshrl.u32 %v636, 7
    %v638 = vsub.s32 %v635, %v637
    %v639 = vrot.slane %v530, %v638
    %vm640 = vcmask 1048512
    %v641 = vsel %vm640, %v639, %v634
    %643 = vst [vmem:[#allocation8] sm:$0x1] %v641
    %v645 = vlaneseq
    %v646 = vshrl.u32 %v645, 7
    %v647 = vsub.s32 0, %v646
    %v648 = vrot.slane %v101, %v647
    %650 = vbcast.lane.b32.xlu0 %v648, 256
    %v651 = vpop.permute.xlu0 %650
    %s653 = sor.u32 256, 8
    %654 = vbcast.lane.b32.xlu0 %v648, %s653
    %v655 = vpop.permute.xlu0 %654
    %s657 = sor.u32 256, 16
    %658 = vbcast.lane.b32.xlu0 %v648, %s657
    %v659 = vpop.permute.xlu0 %658
    %s661 = sor.u32 256, 24
    %662 = vbcast.lane.b32.xlu0 %v648, %s661
    %v663 = vpop.permute.xlu0 %662
    %s665 = sor.u32 256, 32
    %666 = vbcast.lane.b32.xlu0 %v648, %s665
    %v667 = vpop.permute.xlu0 %666
    %s669 = sor.u32 256, 40
    %670 = vbcast.lane.b32.xlu0 %v648, %s669
    %v671 = vpop.permute.xlu0 %670
    %s673 = sor.u32 256, 48
    %674 = vbcast.lane.b32.xlu0 %v648, %s673
    %v675 = vpop.permute.xlu0 %674
    %s677 = sor.u32 256, 56
    %678 = vbcast.lane.b32.xlu0 %v648, %s677
    %v679 = vpop.permute.xlu0 %678
    %s681 = sor.u32 256, 64
    %682 = vbcast.lane.b32.xlu0 %v648, %s681
    %v683 = vpop.permute.xlu0 %682
    %s685 = sor.u32 256, 72
    %686 = vbcast.lane.b32.xlu0 %v648, %s685
    %v687 = vpop.permute.xlu0 %686
    %s689 = sor.u32 256, 80
    %690 = vbcast.lane.b32.xlu0 %v648, %s689
    %v691 = vpop.permute.xlu0 %690
    %s693 = sor.u32 256, 88
    %694 = vbcast.lane.b32.xlu0 %v648, %s693
    %v695 = vpop.permute.xlu0 %694
    %s697 = sor.u32 256, 96
    %698 = vbcast.lane.b32.xlu0 %v648, %s697
    %v699 = vpop.permute.xlu0 %698
    %s701 = sor.u32 256, 104
    %702 = vbcast.lane.b32.xlu0 %v648, %s701
    %v703 = vpop.permute.xlu0 %702
    %s705 = sor.u32 256, 112
    %706 = vbcast.lane.b32.xlu0 %v648, %s705
    %v707 = vpop.permute.xlu0 %706
    %s709 = sor.u32 256, 120
    %710 = vbcast.lane.b32.xlu0 %v648, %s709
    %v711 = vpop.permute.xlu0 %710
    %v728 = vmul.f32 %v451, %v651
    %v729 = vmul.f32 %v452, %v655
    %v730 = vmul.f32 %v453, %v659
    %v731 = vmul.f32 %v454, %v663
    %v732 = vmul.f32 %v455, %v667
    %v733 = vmul.f32 %v456, %v671
    %v734 = vmul.f32 %v457, %v675
    %v735 = vmul.f32 %v458, %v679
    %v736 = vmul.f32 %v459, %v683
    %v737 = vmul.f32 %v460, %v687
    %v738 = vmul.f32 %v461, %v691
    %v739 = vmul.f32 %v462, %v695
    %v740 = vmul.f32 %v463, %v699
    %v741 = vmul.f32 %v464, %v703
    %v742 = vmul.f32 %v465, %v707
    %v743 = vmul.f32 %v466, %v711
    %v744 = vmul.f32 %v335, 5.0
    %v745 = vmul.f32 %v336, 5.0
    %v746 = vmul.f32 %v337, 5.0
    %v747 = vmul.f32 %v338, 5.0
    %v748 = vmul.f32 %v339, 5.0
    %v749 = vmul.f32 %v340, 5.0
    %v750 = vmul.f32 %v341, 5.0
    %v751 = vmul.f32 %v342, 5.0
    %v752 = vmul.f32 %v343, 5.0
    %v753 = vmul.f32 %v344, 5.0
    %v754 = vmul.f32 %v345, 5.0
    %v755 = vmul.f32 %v346, 5.0
    %v756 = vmul.f32 %v347, 5.0
    %v757 = vmul.f32 %v348, 5.0
    %v758 = vmul.f32 %v349, 5.0
    %v759 = vmul.f32 %v350, 5.0
    %v760 = vmul.f32 %v744, %v335
    %v761 = vmul.f32 %v745, %v336
    %v762 = vmul.f32 %v746, %v337
    %v763 = vmul.f32 %v747, %v338
    %v764 = vmul.f32 %v748, %v339
    %v765 = vmul.f32 %v749, %v340
    %v766 = vmul.f32 %v750, %v341
    %v767 = vmul.f32 %v751, %v342
    %v768 = vmul.f32 %v752, %v343
    %v769 = vmul.f32 %v753, %v344
    %v770 = vmul.f32 %v754, %v345
    %v771 = vmul.f32 %v755, %v346
    %v772 = vmul.f32 %v756, %v347
    %v773 = vmul.f32 %v757, %v348
    %v774 = vmul.f32 %v758, %v349
    %v775 = vmul.f32 %v759, %v350
    %v776 = vadd.f32 %v728, %v760
    %v777 = vadd.f32 %v729, %v761
    %v778 = vadd.f32 %v730, %v762
    %v779 = vadd.f32 %v731, %v763
    %v780 = vadd.f32 %v732, %v764
    %v781 = vadd.f32 %v733, %v765
    %v782 = vadd.f32 %v734, %v766
    %v783 = vadd.f32 %v735, %v767
    %v784 = vadd.f32 %v736, %v768
    %v785 = vadd.f32 %v737, %v769
    %v786 = vadd.f32 %v738, %v770
    %v787 = vadd.f32 %v739, %v771
    %v788 = vadd.f32 %v740, %v772
    %v789 = vadd.f32 %v741, %v773
    %v790 = vadd.f32 %v742, %v774
    %v791 = vadd.f32 %v743, %v775
    %808 = vset.pattern.permute.xlu0 0
    %809 = vperm.xlu0 %808, %v776
    %v810 = vpop.permute.xlu0 %809
    %811 = vset.pattern.permute.xlu0 0
    %812 = vperm.xlu0 %811, %v777
    %v813 = vpop.permute.xlu0 %812
    %814 = vset.pattern.permute.xlu0 0
    %815 = vperm.xlu0 %814, %v778
    %v816 = vpop.permute.xlu0 %815
    %817 = vset.pattern.permute.xlu0 0
    %818 = vperm.xlu0 %817, %v779
    %v819 = vpop.permute.xlu0 %818
    %820 = vset.pattern.permute.xlu0 0
    %821 = vperm.xlu0 %820, %v780
    %v822 = vpop.permute.xlu0 %821
    %823 = vset.pattern.permute.xlu0 0
    %824 = vperm.xlu0 %823, %v781
    %v825 = vpop.permute.xlu0 %824
    %826 = vset.pattern.permute.xlu0 0
    %827 = vperm.xlu0 %826, %v782
    %v828 = vpop.permute.xlu0 %827
    %829 = vset.pattern.permute.xlu0 0
    %830 = vperm.xlu0 %829, %v783
    %v831 = vpop.permute.xlu0 %830
    %832 = vset.pattern.permute.xlu0 0
    %833 = vperm.xlu0 %832, %v784
    %v834 = vpop.permute.xlu0 %833
    %835 = vset.pattern.permute.xlu0 0
    %836 = vperm.xlu0 %835, %v785
    %v837 = vpop.permute.xlu0 %836
    %838 = vset.pattern.permute.xlu0 0
    %839 = vperm.xlu0 %838, %v786
    %v840 = vpop.permute.xlu0 %839
    %841 = vset.pattern.permute.xlu0 0
    %842 = vperm.xlu0 %841, %v787
    %v843 = vpop.permute.xlu0 %842
    %844 = vset.pattern.permute.xlu0 0
    %845 = vperm.xlu0 %844, %v788
    %v846 = vpop.permute.xlu0 %845
    %847 = vset.pattern.permute.xlu0 0
    %848 = vperm.xlu0 %847, %v789
    %v849 = vpop.permute.xlu0 %848
    %850 = vset.pattern.permute.xlu0 0
    %851 = vperm.xlu0 %850, %v790
    %v852 = vpop.permute.xlu0 %851
    %853 = vset.pattern.permute.xlu0 0
    %854 = vperm.xlu0 %853, %v791
    %v855 = vpop.permute.xlu0 %854
    %v856 = vlaneseq
    %v857 = vshrl.u32 %v856, 7
    %v858 = vsub.s32 %v532, %v857
    %v859 = vrot.slane %v810, %v858
    %v860 = vlaneseq
    %v861 = vshrl.u32 %v860, 7
    %v862 = vsub.s32 %v537, %v861
    %v863 = vrot.slane %v813, %v862
    %v864 = vsel %vm542, %v863, %v859
    %v865 = vlaneseq
    %v866 = vshrl.u32 %v865, 7
    %v867 = vsub.s32 %v544, %v866
    %v868 = vrot.slane %v816, %v867
    %v869 = vsel %vm549, %v868, %v864
    %v870 = vlaneseq
    %v871 = vshrl.u32 %v870, 7
    %v872 = vsub.s32 %v551, %v871
    %v873 = vrot.slane %v819, %v872
    %v874 = vsel %vm556, %v873, %v869
    %v875 = vlaneseq
    %v876 = vshrl.u32 %v875, 7
    %v877 = vsub.s32 %v558, %v876
    %v878 = vrot.slane %v822, %v877
    %v879 = vsel %vm563, %v878, %v874
    %v880 = vlaneseq
    %v881 = vshrl.u32 %v880, 7
    %v882 = vsub.s32 %v565, %v881
    %v883 = vrot.slane %v825, %v882
    %v884 = vsel %vm570, %v883, %v879
    %v885 = vlaneseq
    %v886 = vshrl.u32 %v885, 7
    %v887 = vsub.s32 %v572, %v886
    %v888 = vrot.slane %v828, %v887
    %v889 = vsel %vm577, %v888, %v884
    %v890 = vlaneseq
    %v891 = vshrl.u32 %v890, 7
    %v892 = vsub.s32 %v579, %v891
    %v893 = vrot.slane %v831, %v892
    %v894 = vsel %vm584, %v893, %v889
    %v895 = vlaneseq
    %v896 = vshrl.u32 %v895, 7
    %v897 = vsub.s32 %v586, %v896
    %v898 = vrot.slane %v834, %v897
    %v899 = vsel %vm591, %v898, %v894
    %v900 = vlaneseq
    %v901 = vshrl.u32 %v900, 7
    %v902 = vsub.s32 %v593, %v901
    %v903 = vrot.slane %v837, %v902
    %v904 = vsel %vm598, %v903, %v899
    %v905 = vlaneseq
    %v906 = vshrl.u32 %v905, 7
    %v907 = vsub.s32 %v600, %v906
    %v908 = vrot.slane %v840, %v907
    %v909 = vsel %vm605, %v908, %v904
    %v910 = vlaneseq
    %v911 = vshrl.u32 %v910, 7
    %v912 = vsub.s32 %v607, %v911
    %v913 = vrot.slane %v843, %v912
    %v914 = vsel %vm612, %v913, %v909
    %v915 = vlaneseq
    %v916 = vshrl.u32 %v915, 7
    %v917 = vsub.s32 %v614, %v916
    %v918 = vrot.slane %v846, %v917
    %v919 = vsel %vm619, %v918, %v914
    %v920 = vlaneseq
    %v921 = vshrl.u32 %v920, 7
    %v922 = vsub.s32 %v621, %v921
    %v923 = vrot.slane %v849, %v922
    %v924 = vsel %vm626, %v923, %v919
    %v925 = vlaneseq
    %v926 = vshrl.u32 %v925, 7
    %v927 = vsub.s32 %v628, %v926
    %v928 = vrot.slane %v852, %v927
    %v929 = vsel %vm633, %v928, %v924
    %v930 = vlaneseq
    %v931 = vshrl.u32 %v930, 7
    %v932 = vsub.s32 %v635, %v931
    %v933 = vrot.slane %v855, %v932
    %v934 = vsel %vm640, %v933, %v929
    %936 = vst [vmem:[#allocation9] sm:$0x1] %v934
    // Predicated region
    $region26: #{tpu_custom_call.1} parent=1 // pred_check
      _
    $region27: #{tpu_custom_call.1} parent=1 // pred_check_branch
      %938 = sbr.rel (0) target = $region29
    $region28: #{tpu_custom_call.1} parent=1 // pred_region
      %s940 = ssub.s32 16, 16
      %941 = vsyncadd [#allocation4], %s940
      %s943 = sshll.u32 [#allocation8], 4
      %s944 = int_to_ptr.vmem [resolvable:$true] %s943
      %946 = dma.vmem_to_hbm [thread:$0]  %s944, 16, %s3, [#allocation4]
    $region29: #{tpu_custom_call.1} parent=1 // pred_fallthru
      _
    // Predicated region
    $region30: #{tpu_custom_call.1} parent=1 // pred_check
      _
    $region31: #{tpu_custom_call.1} parent=1 // pred_check_branch
      %948 = sbr.rel (0) target = $region33
    $region32: #{tpu_custom_call.1} parent=1 // pred_region
      %s950 = ssub.s32 16, 16
      %951 = vsyncadd [#allocation10], %s950
      %s953 = sshll.u32 [#allocation9], 4
      %s954 = int_to_ptr.vmem [resolvable:$true] %s953
      %956 = dma.vmem_to_hbm [thread:$0]  %s954, 16, %s4, [#allocation10]
    $region33: #{tpu_custom_call.1} parent=1 // pred_fallthru
      _
    // Predicated region
    $region34: #{tpu_custom_call.1} parent=1 // pred_check
      _
    $region35: #{tpu_custom_call.1} parent=1 // pred_check_branch
      %958 = sbr.rel (0) target = $region37
    $region36: #{tpu_custom_call.1} parent=1 // pred_region
      %959 = dma.done [#allocation4], 16
    $region37: #{tpu_custom_call.1} parent=1 // pred_fallthru
      _
    // Predicated region
    $region38: #{tpu_custom_call.1} parent=1 // pred_check
      _
    $region39: #{tpu_custom_call.1} parent=1 // pred_check_branch
      %961 = sbr.rel (0) target = $region41
    $region40: #{tpu_custom_call.1} parent=1 // pred_region
      %962 = dma.done [#allocation10], 16
    $region41: #{tpu_custom_call.1} parent=1 // pred_fallthru
      _
    %963 = vsyncpa [#allocation3], 1
    %964 = vsyncpa [#allocation6], 1
    %965 = vsyncpa [#allocation4], 1
    %966 = vsyncpa [#allocation10], 1

</llo_original>
